<compile_context>
chip_gen: v7x
topology: tpu7x:2x2x1
jax: 0.10.0
libtpu: 0.0.40
codegen_flags: <defaults>
</compile_context>

<pallas_src>
import functools
import math

import jax
import jax.numpy as jnp
from jax.experimental import pallas as pl
from jax.experimental.pallas import tpu as pltpu


def _round_up(n, m):
    return ((n + m - 1) // m) * m


def _adapter_kernel(x_ref, g_ref, beta_ref, wd_ref, bd_ref, wu_ref, bu_ref,
                    o_ref, *, scale, add_residual, ln_eps):
    # x_ref: (TM, D) tile of tokens.
    x = x_ref[...].astype(jnp.float32)

    # --- LayerNorm (adapter_layernorm_option == 'in') over last dim, in f32 ---
    mean = jnp.mean(x, axis=-1, keepdims=True)
    xc = x - mean
    var = jnp.mean(xc * xc, axis=-1, keepdims=True)
    x_ln = xc * jax.lax.rsqrt(var + ln_eps)
    x_ln = x_ln * g_ref[...].astype(jnp.float32) + beta_ref[...].astype(jnp.float32)

    # --- down_proj: (TM, D) @ (D, B) + bias.  Cast LHS to the weight dtype so
    # bf16 weights hit the native bf16 MXU path; accumulate in f32. ---
    down = jnp.dot(x_ln.astype(wd_ref.dtype), wd_ref[...],
                   preferred_element_type=jnp.float32)
    # ReLU (dropout p=0.0 is identity).
    down = jnp.maximum(down + bd_ref[...].astype(jnp.float32), 0.0)

    # --- up_proj: (TM, B) @ (B, D) + bias ---
    up = jnp.dot(down.astype(wu_ref.dtype), wu_ref[...],
                 preferred_element_type=jnp.float32)
    out = (up + bu_ref[...].astype(jnp.float32)) * scale

    if add_residual:
        # Re-read the input tile instead of keeping the f32 copy of x alive
        # across both matmuls.
        out = out + x_ref[...].astype(jnp.float32)

    o_ref[...] = out.astype(o_ref.dtype)


def da_adapter_text(x, params, *, scale=0.1, add_residual=False,
                    ln_eps=1e-5, tile_rows=512):
    """x: (batch, seq, d_model).  params: dict of adapter parameters."""
    B, S, D = x.shape
    N = B * S
    x2d = x.reshape(N, D)

    gamma = params["ln_gamma"].reshape(1, D)
    beta = params["ln_beta"].reshape(1, D)
    wd = params["down_w"]          # (D, bottleneck)  == down_proj.weight.T
    bd = params["down_b"].reshape(1, -1)
    wu = params["up_w"]            # (bottleneck, D)  == up_proj.weight.T
    bu = params["up_b"].reshape(1, D)
    Kb = wd.shape[1]
    # TODO(synk): Kb (=bottleneck, 16 in the module) is not a multiple of 128,
    # so the down-proj output lanes are masked; padding Kb would require a
    # config change in the original module, so it is left as-is.

    x_bytes = jnp.dtype(x.dtype).itemsize
    w_bytes = jnp.dtype(wd.dtype).itemsize

    # --- Pick the row-tile size under a VMEM I/O budget (double-buffered
    # x/out tiles + f32 intermediates), leaving headroom for weights and
    # compiler scratch even on v7x (64 MiB VMEM per TensorCore). ---
    io_budget = 40 * 1024 * 1024
    per_row_bytes = D * (4 * x_bytes + 3 * 4) + Kb * 4
    max_rows = max(8, (io_budget // per_row_bytes) // 8 * 8)
    tile_rows = max(8, min(int(tile_rows), max_rows, _round_up(N, 8)))
    tile_rows = _round_up(tile_rows, 8)
    grid_m = pl.cdiv(N, tile_rows)

    weight_bytes = 2 * D * Kb * w_bytes + (4 * D + Kb) * 4
    tile_io_bytes = tile_rows * per_row_bytes
    vmem_limit = int(1.5 * (tile_io_bytes + weight_bytes)) + (4 << 20)
    vmem_limit = min(max(vmem_limit, 32 << 20), 56 << 20)

    kernel = functools.partial(_adapter_kernel, scale=scale,
                               add_residual=add_residual, ln_eps=ln_eps)

    def _build(single_buffer_invariants):
        # Grid-invariant operands never get re-DMA'd; request a single VMEM
        # buffer for them instead of the default double buffer.
        inv = ({"pipeline_mode": pl.Buffered(1)}
               if single_buffer_invariants else {})
        in_specs = [
            pl.BlockSpec((tile_rows, D), lambda i: (i, 0)),          # x tile
            pl.BlockSpec((1, D), lambda i: (0, 0), **inv),           # ln gamma
            pl.BlockSpec((1, D), lambda i: (0, 0), **inv),           # ln beta
            pl.BlockSpec((D, Kb), lambda i: (0, 0), **inv),          # Wd
            pl.BlockSpec((1, Kb), lambda i: (0, 0), **inv),          # bd
            pl.BlockSpec((Kb, D), lambda i: (0, 0), **inv),          # Wu
            pl.BlockSpec((1, D), lambda i: (0, 0), **inv),           # bu
        ]
        return pl.pallas_call(
            kernel,
            out_shape=jax.ShapeDtypeStruct((N, D), x.dtype),
            grid_spec=pltpu.PrefetchScalarGridSpec(
                num_scalar_prefetch=0,
                grid=(grid_m,),
                in_specs=in_specs,
                out_specs=pl.BlockSpec((tile_rows, D), lambda i: (i, 0)),
            ),
            compiler_params=pltpu.CompilerParams(
                dimension_semantics=("parallel",),
                vmem_limit_bytes=vmem_limit),
        )

    try:
        out2d = _build(True)(x2d, gamma, beta, wd, bd, wu, bu)
    except Exception:
        # Defensive fallback if Buffered(1) is rejected by this jax version;
        # semantics are identical, only the weight buffering differs.
        out2d = _build(False)(x2d, gamma, beta, wd, bd, wu, bu)

    return out2d.reshape(B, S, D)


def init_adapter_params(key, d_model, bottleneck, dtype=jnp.float32):
    """Init mirroring the module's __init__:
    kaiming_uniform(a=sqrt(5)) on an (out, in) weight => U(-1/sqrt(in), 1/sqrt(in));
    biases explicitly re-initialized with torch.nn.init.uniform_ => U(0, 1)."""
    k1, k2, k3, k4 = jax.random.split(key, 4)
    bd_down = 1.0 / math.sqrt(d_model)     # down_proj.weight: (bottleneck, d_model)
    bd_up = 1.0 / math.sqrt(bottleneck)    # up_proj.weight:   (d_model, bottleneck)
    # stored transposed (in, out) for row-major matmul inside the kernel
    down_w = jax.random.uniform(k1, (d_model, bottleneck), dtype,
                                minval=-bd_down, maxval=bd_down)
    up_w = jax.random.uniform(k2, (bottleneck, d_model), dtype,
                              minval=-bd_up, maxval=bd_up)
    down_b = jax.random.uniform(k3, (bottleneck,), dtype, minval=0.0, maxval=1.0)
    up_b = jax.random.uniform(k4, (d_model,), dtype, minval=0.0, maxval=1.0)
    return {
        "ln_gamma": jnp.ones((d_model,), dtype),
        "ln_beta": jnp.zeros((d_model,), dtype),
        "down_w": down_w,
        "down_b": down_b,
        "up_w": up_w,
        "up_b": up_b,
    }


def _reference(x, params, scale=0.1, add_residual=False, eps=1e-5):
    xf = x.astype(jnp.float32)
    mean = xf.mean(-1, keepdims=True)
    var = ((xf - mean) ** 2).mean(-1, keepdims=True)
    xn = (xf - mean) / jnp.sqrt(var + eps)
    xn = xn * params["ln_gamma"] + params["ln_beta"]
    down = jnp.maximum(xn @ params["down_w"] + params["down_b"], 0.0)
    up = down @ params["up_w"] + params["up_b"]
    out = up * scale
    if add_residual:
        out = out + xf
    return out.astype(x.dtype)


if __name__ == "__main__":
    key = jax.random.PRNGKey(0)
    batch, seq, d_model, bottleneck = 2, 8, 32, 16

    kx, kp = jax.random.split(key)
    x = jax.random.normal(kx, (batch, seq, d_model), jnp.float32)
    params = init_adapter_params(kp, d_model, bottleneck)

    ok = True
    for add_res in (False, True):
        out = da_adapter_text(x, params, scale=0.1, add_residual=add_res)
        out = jax.block_until_ready(out)
        ref = _reference(x, params, scale=0.1, add_residual=add_res)
        assert out.shape == (batch, seq, d_model)
        # Tolerance accounts for possible MXU f32 pass-count differences
        # between the Pallas matmul and the XLA reference matmul.
        ok &= bool(jnp.allclose(out, ref, atol=1e-2, rtol=1e-2))
    assert ok, "mismatch vs reference"

    print("KERNEL_OK")
</pallas_src>

<mosaic_0001>
module attributes {stable_mosaic.version = 11 : i64} {
  func.func @_adapter_kernel(%arg0: i32, %arg1: memref<16x32xf32, #tpu.memory_space<vmem>>, %arg2: memref<1x32xf32, #tpu.memory_space<vmem>>, %arg3: memref<1x32xf32, #tpu.memory_space<vmem>>, %arg4: memref<32x16xf32, #tpu.memory_space<vmem>>, %arg5: memref<1x16xf32, #tpu.memory_space<vmem>>, %arg6: memref<16x32xf32, #tpu.memory_space<vmem>>, %arg7: memref<1x32xf32, #tpu.memory_space<vmem>>, %arg8: memref<16x32xf32, #tpu.memory_space<vmem>>) attributes {dimension_semantics = [#tpu.dimension_semantics<parallel>], iteration_bounds = array<i64: 1>, scalar_prefetch = 0 : i64, scratch_operands = 0 : i64, tpu.core_type = #tpu.core_type<tc>, window_params = [{transform_indices = @transform_0, window_bounds = array<i64: 16, 32>}, {pipeline_mode = #tpu.pipeline_mode<synchronous>, transform_indices = @transform_1, window_bounds = array<i64: 1, 32>}, {pipeline_mode = #tpu.pipeline_mode<synchronous>, transform_indices = @transform_2, window_bounds = array<i64: 1, 32>}, {pipeline_mode = #tpu.pipeline_mode<synchronous>, transform_indices = @transform_3, window_bounds = array<i64: 32, 16>}, {pipeline_mode = #tpu.pipeline_mode<synchronous>, transform_indices = @transform_4, window_bounds = array<i64: 1, 16>}, {pipeline_mode = #tpu.pipeline_mode<synchronous>, transform_indices = @transform_5, window_bounds = array<i64: 16, 32>}, {pipeline_mode = #tpu.pipeline_mode<synchronous>, transform_indices = @transform_6, window_bounds = array<i64: 1, 32>}, {transform_indices = @transform_7, window_bounds = array<i64: 16, 32>}]} {
    %c0 = arith.constant 0 : index
    %c0_0 = arith.constant 0 : index
    %0 = vector.load %arg1[%c0, %c0_0] : memref<16x32xf32, #tpu.memory_space<vmem>>, vector<16x32xf32>
    %cst = arith.constant dense<0.000000e+00> : vector<16xf32>
    %1 = vector.multi_reduction <add>, %0, %cst [1] : vector<16x32xf32> to vector<16xf32>
    %2 = vector.shape_cast %1 : vector<16xf32> to vector<16x1xf32>
    %cst_1 = arith.constant 3.200000e+01 : f32
    %3 = vector.broadcast %cst_1 : f32 to vector<16x1xf32>
    %4 = arith.divf %2, %3 : vector<16x1xf32>
    %5 = vector.broadcast %4 : vector<16x1xf32> to vector<16x32xf32>
    %6 = arith.subf %0, %5 : vector<16x32xf32>
    %7 = arith.mulf %6, %6 : vector<16x32xf32>
    %cst_2 = arith.constant dense<0.000000e+00> : vector<16xf32>
    %8 = vector.multi_reduction <add>, %7, %cst_2 [1] : vector<16x32xf32> to vector<16xf32>
    %9 = vector.shape_cast %8 : vector<16xf32> to vector<16x1xf32>
    %cst_3 = arith.constant 3.200000e+01 : f32
    %10 = vector.broadcast %cst_3 : f32 to vector<16x1xf32>
    %11 = arith.divf %9, %10 : vector<16x1xf32>
    %cst_4 = arith.constant 9.99999974E-6 : f32
    %12 = vector.broadcast %cst_4 : f32 to vector<16x1xf32>
    %13 = arith.addf %11, %12 : vector<16x1xf32>
    %14 = math.rsqrt %13 : vector<16x1xf32>
    %15 = vector.broadcast %14 : vector<16x1xf32> to vector<16x32xf32>
    %16 = arith.mulf %6, %15 : vector<16x32xf32>
    %c0_5 = arith.constant 0 : index
    %c0_6 = arith.constant 0 : index
    %17 = vector.load %arg2[%c0_5, %c0_6] : memref<1x32xf32, #tpu.memory_space<vmem>>, vector<1x32xf32>
    %18 = vector.broadcast %17 : vector<1x32xf32> to vector<16x32xf32>
    %19 = arith.mulf %16, %18 : vector<16x32xf32>
    %c0_7 = arith.constant 0 : index
    %c0_8 = arith.constant 0 : index
    %20 = vector.load %arg3[%c0_7, %c0_8] : memref<1x32xf32, #tpu.memory_space<vmem>>, vector<1x32xf32>
    %21 = vector.broadcast %20 : vector<1x32xf32> to vector<16x32xf32>
    %22 = arith.addf %19, %21 : vector<16x32xf32>
    %c0_9 = arith.constant 0 : index
    %c0_10 = arith.constant 0 : index
    %23 = vector.load %arg4[%c0_9, %c0_10] : memref<32x16xf32, #tpu.memory_space<vmem>>, vector<32x16xf32>
    %cst_11 = arith.constant dense<0.000000e+00> : vector<16x16xf32>
    %24 = tpu.matmul %22, %23, %cst_11 {dimension_numbers = #tpu.dot_dimension_numbers<[1], [0], [0], [1], [0, 0, 1, 1], [], []>} : vector<16x32xf32>, vector<32x16xf32>, vector<16x16xf32> -> vector<16x16xf32>
    %c0_12 = arith.constant 0 : index
    %c0_13 = arith.constant 0 : index
    %25 = vector.load %arg5[%c0_12, %c0_13] : memref<1x16xf32, #tpu.memory_space<vmem>>, vector<1x16xf32>
    %26 = vector.broadcast %25 : vector<1x16xf32> to vector<16x16xf32>
    %27 = arith.addf %24, %26 : vector<16x16xf32>
    %cst_14 = arith.constant 0.000000e+00 : f32
    %28 = vector.broadcast %cst_14 : f32 to vector<16x16xf32>
    %29 = arith.maximumf %27, %28 : vector<16x16xf32>
    %c0_15 = arith.constant 0 : index
    %c0_16 = arith.constant 0 : index
    %30 = vector.load %arg6[%c0_15, %c0_16] : memref<16x32xf32, #tpu.memory_space<vmem>>, vector<16x32xf32>
    %cst_17 = arith.constant dense<0.000000e+00> : vector<16x32xf32>
    %31 = tpu.matmul %29, %30, %cst_17 {dimension_numbers = #tpu.dot_dimension_numbers<[1], [0], [0], [1], [0, 0, 1, 1], [], []>} : vector<16x16xf32>, vector<16x32xf32>, vector<16x32xf32> -> vector<16x32xf32>
    %c0_18 = arith.constant 0 : index
    %c0_19 = arith.constant 0 : index
    %32 = vector.load %arg7[%c0_18, %c0_19] : memref<1x32xf32, #tpu.memory_space<vmem>>, vector<1x32xf32>
    %33 = vector.broadcast %32 : vector<1x32xf32> to vector<16x32xf32>
    %34 = arith.addf %31, %33 : vector<16x32xf32>
    %cst_20 = arith.constant 1.000000e-01 : f32
    %35 = vector.broadcast %cst_20 : f32 to vector<16x32xf32>
    %36 = arith.mulf %34, %35 : vector<16x32xf32>
    %c0_21 = arith.constant 0 : index
    %c0_22 = arith.constant 0 : index
    %37 = vector.load %arg8[%c0_21, %c0_22] : memref<16x32xf32, #tpu.memory_space<vmem>>, vector<16x32xf32>
    tpu.vector_store %arg8[%c0_21, %c0_22], %36 {strides = array<i32>} : memref<16x32xf32, #tpu.memory_space<vmem>>, vector<16x32xf32>,
    return
  }
  func.func @transform_0(%arg0: i32) -> (i32, i32) {
    %c0_i32 = arith.constant 0 : i32
    %c0_i32_0 = arith.constant 0 : i32
    return %arg0, %c0_i32 : i32, i32
  }
  func.func @transform_1(%arg0: i32) -> (i32, i32) {
    %c0_i32 = arith.constant 0 : i32
    %c0_i32_0 = arith.constant 0 : i32
    %c0_i32_1 = arith.constant 0 : i32
    return %c0_i32, %c0_i32_0 : i32, i32
  }
  func.func @transform_2(%arg0: i32) -> (i32, i32) {
    %c0_i32 = arith.constant 0 : i32
    %c0_i32_0 = arith.constant 0 : i32
    %c0_i32_1 = arith.constant 0 : i32
    return %c0_i32, %c0_i32_0 : i32, i32
  }
  func.func @transform_3(%arg0: i32) -> (i32, i32) {
    %c0_i32 = arith.constant 0 : i32
    %c0_i32_0 = arith.constant 0 : i32
    %c0_i32_1 = arith.constant 0 : i32
    return %c0_i32, %c0_i32_0 : i32, i32
  }
  func.func @transform_4(%arg0: i32) -> (i32, i32) {
    %c0_i32 = arith.constant 0 : i32
    %c0_i32_0 = arith.constant 0 : i32
    %c0_i32_1 = arith.constant 0 : i32
    return %c0_i32, %c0_i32_0 : i32, i32
  }
  func.func @transform_5(%arg0: i32) -> (i32, i32) {
    %c0_i32 = arith.constant 0 : i32
    %c0_i32_0 = arith.constant 0 : i32
    %c0_i32_1 = arith.constant 0 : i32
    return %c0_i32, %c0_i32_0 : i32, i32
  }
  func.func @transform_6(%arg0: i32) -> (i32, i32) {
    %c0_i32 = arith.constant 0 : i32
    %c0_i32_0 = arith.constant 0 : i32
    %c0_i32_1 = arith.constant 0 : i32
    return %c0_i32, %c0_i32_0 : i32, i32
  }
  func.func @transform_7(%arg0: i32) -> (i32, i32) {
    %c0_i32 = arith.constant 0 : i32
    %c0_i32_0 = arith.constant 0 : i32
    return %arg0, %c0_i32 : i32, i32
  }
}

module attributes {stable_mosaic.version = 11 : i64} {
  func.func @_adapter_kernel(%arg0: i32, %arg1: memref<16x32xf32, #tpu.memory_space<vmem>>, %arg2: memref<1x32xf32, #tpu.memory_space<vmem>>, %arg3: memref<1x32xf32, #tpu.memory_space<vmem>>, %arg4: memref<32x16xf32, #tpu.memory_space<vmem>>, %arg5: memref<1x16xf32, #tpu.memory_space<vmem>>, %arg6: memref<16x32xf32, #tpu.memory_space<vmem>>, %arg7: memref<1x32xf32, #tpu.memory_space<vmem>>, %arg8: memref<16x32xf32, #tpu.memory_space<vmem>>) attributes {dimension_semantics = [#tpu.dimension_semantics<parallel>], iteration_bounds = array<i64: 1>, scalar_prefetch = 0 : i64, scratch_operands = 0 : i64, tpu.core_type = #tpu.core_type<tc>, window_params = [{transform_indices = @transform_0, window_bounds = array<i64: 16, 32>}, {pipeline_mode = #tpu.pipeline_mode<synchronous>, transform_indices = @transform_1, window_bounds = array<i64: 1, 32>}, {pipeline_mode = #tpu.pipeline_mode<synchronous>, transform_indices = @transform_2, window_bounds = array<i64: 1, 32>}, {pipeline_mode = #tpu.pipeline_mode<synchronous>, transform_indices = @transform_3, window_bounds = array<i64: 32, 16>}, {pipeline_mode = #tpu.pipeline_mode<synchronous>, transform_indices = @transform_4, window_bounds = array<i64: 1, 16>}, {pipeline_mode = #tpu.pipeline_mode<synchronous>, transform_indices = @transform_5, window_bounds = array<i64: 16, 32>}, {pipeline_mode = #tpu.pipeline_mode<synchronous>, transform_indices = @transform_6, window_bounds = array<i64: 1, 32>}, {transform_indices = @transform_7, window_bounds = array<i64: 16, 32>}]} {
    %c0 = arith.constant 0 : index
    %c0_0 = arith.constant 0 : index
    %0 = vector.load %arg1[%c0, %c0_0] : memref<16x32xf32, #tpu.memory_space<vmem>>, vector<16x32xf32>
    %cst = arith.constant dense<0.000000e+00> : vector<16xf32>
    %1 = vector.multi_reduction <add>, %0, %cst [1] : vector<16x32xf32> to vector<16xf32>
    %2 = vector.shape_cast %1 : vector<16xf32> to vector<16x1xf32>
    %cst_1 = arith.constant 3.200000e+01 : f32
    %3 = vector.broadcast %cst_1 : f32 to vector<16x1xf32>
    %4 = arith.divf %2, %3 : vector<16x1xf32>
    %5 = vector.broadcast %4 : vector<16x1xf32> to vector<16x32xf32>
    %6 = arith.subf %0, %5 : vector<16x32xf32>
    %7 = arith.mulf %6, %6 : vector<16x32xf32>
    %cst_2 = arith.constant dense<0.000000e+00> : vector<16xf32>
    %8 = vector.multi_reduction <add>, %7, %cst_2 [1] : vector<16x32xf32> to vector<16xf32>
    %9 = vector.shape_cast %8 : vector<16xf32> to vector<16x1xf32>
    %cst_3 = arith.constant 3.200000e+01 : f32
    %10 = vector.broadcast %cst_3 : f32 to vector<16x1xf32>
    %11 = arith.divf %9, %10 : vector<16x1xf32>
    %cst_4 = arith.constant 9.99999974E-6 : f32
    %12 = vector.broadcast %cst_4 : f32 to vector<16x1xf32>
    %13 = arith.addf %11, %12 : vector<16x1xf32>
    %14 = math.rsqrt %13 : vector<16x1xf32>
    %15 = vector.broadcast %14 : vector<16x1xf32> to vector<16x32xf32>
    %16 = arith.mulf %6, %15 : vector<16x32xf32>
    %c0_5 = arith.constant 0 : index
    %c0_6 = arith.constant 0 : index
    %17 = vector.load %arg2[%c0_5, %c0_6] : memref<1x32xf32, #tpu.memory_space<vmem>>, vector<1x32xf32>
    %18 = vector.broadcast %17 : vector<1x32xf32> to vector<16x32xf32>
    %19 = arith.mulf %16, %18 : vector<16x32xf32>
    %c0_7 = arith.constant 0 : index
    %c0_8 = arith.constant 0 : index
    %20 = vector.load %arg3[%c0_7, %c0_8] : memref<1x32xf32, #tpu.memory_space<vmem>>, vector<1x32xf32>
    %21 = vector.broadcast %20 : vector<1x32xf32> to vector<16x32xf32>
    %22 = arith.addf %19, %21 : vector<16x32xf32>
    %c0_9 = arith.constant 0 : index
    %c0_10 = arith.constant 0 : index
    %23 = vector.load %arg4[%c0_9, %c0_10] : memref<32x16xf32, #tpu.memory_space<vmem>>, vector<32x16xf32>
    %cst_11 = arith.constant dense<0.000000e+00> : vector<16x16xf32>
    %24 = tpu.matmul %22, %23, %cst_11 {dimension_numbers = #tpu.dot_dimension_numbers<[1], [0], [0], [1], [0, 0, 1, 1], [], []>} : vector<16x32xf32>, vector<32x16xf32>, vector<16x16xf32> -> vector<16x16xf32>
    %c0_12 = arith.constant 0 : index
    %c0_13 = arith.constant 0 : index
    %25 = vector.load %arg5[%c0_12, %c0_13] : memref<1x16xf32, #tpu.memory_space<vmem>>, vector<1x16xf32>
    %26 = vector.broadcast %25 : vector<1x16xf32> to vector<16x16xf32>
    %27 = arith.addf %24, %26 : vector<16x16xf32>
    %cst_14 = arith.constant 0.000000e+00 : f32
    %28 = vector.broadcast %cst_14 : f32 to vector<16x16xf32>
    %29 = arith.maximumf %27, %28 : vector<16x16xf32>
    %c0_15 = arith.constant 0 : index
    %c0_16 = arith.constant 0 : index
    %30 = vector.load %arg6[%c0_15, %c0_16] : memref<16x32xf32, #tpu.memory_space<vmem>>, vector<16x32xf32>
    %cst_17 = arith.constant dense<0.000000e+00> : vector<16x32xf32>
    %31 = tpu.matmul %29, %30, %cst_17 {dimension_numbers = #tpu.dot_dimension_numbers<[1], [0], [0], [1], [0, 0, 1, 1], [], []>} : vector<16x16xf32>, vector<16x32xf32>, vector<16x32xf32> -> vector<16x32xf32>
    %c0_18 = arith.constant 0 : index
    %c0_19 = arith.constant 0 : index
    %32 = vector.load %arg7[%c0_18, %c0_19] : memref<1x32xf32, #tpu.memory_space<vmem>>, vector<1x32xf32>
    %33 = vector.broadcast %32 : vector<1x32xf32> to vector<16x32xf32>
    %34 = arith.addf %31, %33 : vector<16x32xf32>
    %cst_20 = arith.constant 1.000000e-01 : f32
    %35 = vector.broadcast %cst_20 : f32 to vector<16x32xf32>
    %36 = arith.mulf %34, %35 : vector<16x32xf32>
    %c0_21 = arith.constant 0 : index
    %c0_22 = arith.constant 0 : index
    %37 = vector.load %arg8[%c0_21, %c0_22] : memref<16x32xf32, #tpu.memory_space<vmem>>, vector<16x32xf32>
    tpu.vector_store %arg8[%c0_21, %c0_22], %36 {strides = array<i32>} : memref<16x32xf32, #tpu.memory_space<vmem>>, vector<16x32xf32>,
    return
  }
  func.func @transform_0(%arg0: i32) -> (i32, i32) {
    %c0_i32 = arith.constant 0 : i32
    %c0_i32_0 = arith.constant 0 : i32
    return %arg0, %c0_i32 : i32, i32
  }
  func.func @transform_1(%arg0: i32) -> (i32, i32) {
    %c0_i32 = arith.constant 0 : i32
    %c0_i32_0 = arith.constant 0 : i32
    %c0_i32_1 = arith.constant 0 : i32
    return %c0_i32, %c0_i32_0 : i32, i32
  }
  func.func @transform_2(%arg0: i32) -> (i32, i32) {
    %c0_i32 = arith.constant 0 : i32
    %c0_i32_0 = arith.constant 0 : i32
    %c0_i32_1 = arith.constant 0 : i32
    return %c0_i32, %c0_i32_0 : i32, i32
  }
  func.func @transform_3(%arg0: i32) -> (i32, i32) {
    %c0_i32 = arith.constant 0 : i32
    %c0_i32_0 = arith.constant 0 : i32
    %c0_i32_1 = arith.constant 0 : i32
    return %c0_i32, %c0_i32_0 : i32, i32
  }
  func.func @transform_4(%arg0: i32) -> (i32, i32) {
    %c0_i32 = arith.constant 0 : i32
    %c0_i32_0 = arith.constant 0 : i32
    %c0_i32_1 = arith.constant 0 : i32
    return %c0_i32, %c0_i32_0 : i32, i32
  }
  func.func @transform_5(%arg0: i32) -> (i32, i32) {
    %c0_i32 = arith.constant 0 : i32
    %c0_i32_0 = arith.constant 0 : i32
    %c0_i32_1 = arith.constant 0 : i32
    return %c0_i32, %c0_i32_0 : i32, i32
  }
  func.func @transform_6(%arg0: i32) -> (i32, i32) {
    %c0_i32 = arith.constant 0 : i32
    %c0_i32_0 = arith.constant 0 : i32
    %c0_i32_1 = arith.constant 0 : i32
    return %c0_i32, %c0_i32_0 : i32, i32
  }
  func.func @transform_7(%arg0: i32) -> (i32, i32) {
    %c0_i32 = arith.constant 0 : i32
    %c0_i32_0 = arith.constant 0 : i32
    return %arg0, %c0_i32 : i32, i32
  }
}

</mosaic_0001>

<llo_original>
// kernel: tpu_custom_call.1
$region0: #{tpu_custom_call.1}
  #allocation0 [shape = 'u32[]', space=smem, size = 0x4, offset = 0x4, fixed_abs, tag = 'smem constant byte address 0x4 - core index']
  #allocation1 [shape = 'u32[144,128]{1,0:T(1,128)}', space=vmem, size = 0x12000, scoped, tag = 'internal scratch']
  %s0 = inlined_call_operand.vmem [shape: f32[16,32], index: 0, kind: input, shape index: {}]
  %s1 = inlined_call_operand.vmem [shape: f32[1,32], index: 1, kind: input, shape index: {}]
  %s2 = inlined_call_operand.vmem [shape: f32[1,32], index: 2, kind: input, shape index: {}]
  %s3 = inlined_call_operand.vmem [shape: f32[32,16], index: 3, kind: input, shape index: {}]
  %s4 = inlined_call_operand.vmem [shape: f32[1,16], index: 4, kind: input, shape index: {}]
  %s5 = inlined_call_operand.vmem [shape: f32[16,32], index: 5, kind: input, shape index: {}]
  %s6 = inlined_call_operand.vmem [shape: f32[1,32], index: 6, kind: input, shape index: {}]
  %s7 = inlined_call_operand.hbm [shape: f32[16,32], index: 7, kind: output, shape index: {}]
  %s8 = sld [smem:[#allocation0]]
  $region38: #{tpu_custom_call.1} parent=0
    _
  %s10 = ssub.s32 1, %s8
  %s11 = scalar_select 0, %s10, %s8
  $region1: #{tpu_custom_call.1} parent=0
    #allocation2 [shape = 'u8[8192]{0}', space=vmem, size = 0x2000, scoped, tag = 'output window, operand 0, single buffered']
    #allocation3 [shape = 's32[1]{0}', space=sflag, size = 0x4, scoped, tag = 'scoped memory for tpu_custom_call.1']
    %12 = vsyncpa [#allocation3], 0
    // Predicated region
    $region2: #{tpu_custom_call.1} parent=1 // pred_check
      _
    $region3: #{tpu_custom_call.1} parent=1 // pred_check_branch
      %14 = sbr.rel (0) target = $region5
    $region4: #{tpu_custom_call.1} parent=1 // pred_region
      _
    $region5: #{tpu_custom_call.1} parent=1 // pred_fallthru
      _
    // Predicated region
    $region6: #{tpu_custom_call.1} parent=1 // pred_check
      _
    $region7: #{tpu_custom_call.1} parent=1 // pred_check_branch
      %16 = sbr.rel (0) target = $region9
    $region8: #{tpu_custom_call.1} parent=1 // pred_region
      _
    $region9: #{tpu_custom_call.1} parent=1 // pred_fallthru
      _
    // Predicated region
    $region10: #{tpu_custom_call.1} parent=1 // pred_check
      _
    $region11: #{tpu_custom_call.1} parent=1 // pred_check_branch
      %18 = sbr.rel (0) target = $region13
    $region12: #{tpu_custom_call.1} parent=1 // pred_region
      _
    $region13: #{tpu_custom_call.1} parent=1 // pred_fallthru
      _
    // Predicated region
    $region14: #{tpu_custom_call.1} parent=1 // pred_check
      _
    $region15: #{tpu_custom_call.1} parent=1 // pred_check_branch
      %20 = sbr.rel (0) target = $region17
    $region16: #{tpu_custom_call.1} parent=1 // pred_region
      _
    $region17: #{tpu_custom_call.1} parent=1 // pred_fallthru
      _
    // Predicated region
    $region18: #{tpu_custom_call.1} parent=1 // pred_check
      _
    $region19: #{tpu_custom_call.1} parent=1 // pred_check_branch
      %22 = sbr.rel (0) target = $region21
    $region20: #{tpu_custom_call.1} parent=1 // pred_region
      _
    $region21: #{tpu_custom_call.1} parent=1 // pred_fallthru
      _
    // Predicated region
    $region22: #{tpu_custom_call.1} parent=1 // pred_check
      _
    $region23: #{tpu_custom_call.1} parent=1 // pred_check_branch
      %24 = sbr.rel (0) target = $region25
    $region24: #{tpu_custom_call.1} parent=1 // pred_region
      _
    $region25: #{tpu_custom_call.1} parent=1 // pred_fallthru
      _
    // Predicated region
    $region26: #{tpu_custom_call.1} parent=1 // pred_check
      _
    $region27: #{tpu_custom_call.1} parent=1 // pred_check_branch
      %26 = sbr.rel (0) target = $region29
    $region28: #{tpu_custom_call.1} parent=1 // pred_region
      _
    $region29: #{tpu_custom_call.1} parent=1 // pred_fallthru
      _
    %v27 = vld [vmem:[%s0] sm:$0xff]
    %v28 = vld [vmem:[%s0 + $0x8] sm:$0xff]
    %vm29 = vcmask 261120
    %v30 = vsel %vm29, %v27, 0.0
    %31 = vadd.xlane.f32.xlu0 %v30
    %v32 = vpop.xlane.xlu0 %31
    %v33 = vsel %vm29, %v28, 0.0
    %34 = vadd.xlane.f32.xlu0 %v33
    %v35 = vpop.xlane.xlu0 %34
    %v36 = vrcp.pop 32.0
    %v37 = vmul.f32 %v32, %v36
    %v38 = vmul.f32 %v35, %v36
    %v39 = vsub.f32 %v27, %v37
    %v40 = vsub.f32 %v28, %v38
    %v41 = vmul.f32 %v39, %v39
    %v42 = vmul.f32 %v40, %v40
    %v43 = vsel %vm29, %v41, 0.0
    %44 = vadd.xlane.f32.xlu0 %v43
    %v45 = vpop.xlane.xlu0 %44
    %v46 = vsel %vm29, %v42, 0.0
    %47 = vadd.xlane.f32.xlu0 %v46
    %v48 = vpop.xlane.xlu0 %47
    %v49 = vmul.f32 %v45, %v36
    %v50 = vmul.f32 %v48, %v36
    %v51 = vadd.f32 %v49, 1e-05
    %v52 = vadd.f32 %v50, 1e-05
    %v53 = vrsqrt.pop %v51
    %v54 = vrsqrt.pop %v52
    %v55 = vmul.f32 %v39, %v53
    %v56 = vmul.f32 %v40, %v54
    %v57 = vld [vmem:[%s1] sm:$0x1]
    %v59 = vlaneseq
    %v60 = vshrl.u32 %v59, 7
    %v61 = vsub.s32 0, %v60
    %v62 = vrot.slane %v57, %v61
    %v64 = vmul.f32 %v55, %v62
    %v65 = vmul.f32 %v56, %v62
    %v66 = vld [vmem:[%s2] sm:$0x1]
    %v68 = vlaneseq
    %v69 = vshrl.u32 %v68, 7
    %v70 = vsub.s32 0, %v69
    %v71 = vrot.slane %v66, %v70
    %v73 = vadd.f32 %v64, %v71
    %v74 = vadd.f32 %v65, %v71
    %v75 = vld [vmem:[%s3] sm:$0xff]
    %v76 = vld [vmem:[%s3 + $0x8] sm:$0xff]
    %v77 = vld [vmem:[%s3 + $0x10] sm:$0xff]
    %v78 = vld [vmem:[%s3 + $0x18] sm:$0xff]
    %v79 = vld [vmem:[%s4] sm:$0x1]
    %v81 = vlaneseq
    %v82 = vshrl.u32 %v81, 7
    %v83 = vsub.s32 0, %v82
    %v84 = vrot.slane %v79, %v83
    %v87 = vsel %vm29, %v73, 0
    %v90 = vsel %vm29, %v74, 0
    %92 = vmatprep.subr.mxu0 0.0
    %93 = vmatpush1.msra.mxu0 %v75
    %94 = vmatprep.subr.mxu0 0.0
    %95 = vmatpush1.msra.mxu0 %v76
    %96 = vmatprep.subr.mxu0 0.0
    %97 = vmatpush1.msra.mxu0 %v77
    %98 = vmatprep.subr.mxu0 0.0
    %99 = vmatpush1.msra.mxu0 %v78
    %100 = vmatprep.subr.mxu0 0.0
    %101 = vmatpush1.msra.mxu0 0.0
    %102 = vmatprep.subr.mxu0 0.0
    %103 = vmatpush1.msra.mxu0 0.0
    %104 = vmatprep.subr.mxu0 0.0
    %105 = vmatpush1.msra.mxu0 0.0
    %106 = vmatprep.subr.mxu0 0.0
    %107 = vmatpush1.msra.mxu0 0.0
    %108 = vmatprep.subr.mxu0 0.0
    %109 = vmatpush1.msra.mxu0 0.0
    %110 = vmatprep.subr.mxu0 0.0
    %111 = vmatpush1.msra.mxu0 0.0
    %112 = vmatprep.subr.mxu0 0.0
    %113 = vmatpush1.msra.mxu0 0.0
    %114 = vmatprep.subr.mxu0 0.0
    %115 = vmatpush1.msra.mxu0 0.0
    %116 = vmatprep.subr.mxu0 0.0
    %117 = vmatpush1.msra.mxu0 0.0
    %118 = vmatprep.subr.mxu0 0.0
    %119 = vmatpush1.msra.mxu0 0.0
    %120 = vmatprep.subr.mxu0 0.0
    %121 = vmatpush1.msra.mxu0 0.0
    %122 = vmatprep.subr.mxu0 0.0
    %123 = vmatpush1.msra.mxu0 0.0
    %124 = vmatprep.subr.mxu0 0.0
    %125 = vmatpush1.msra.mxu0 0.0
    %126 = vmatprep.subr.mxu0 0.0
    %127 = vmatpush1.msra.mxu0 0.0
    %128 = vmatprep.subr.mxu0 0.0
    %129 = vmatpush1.msra.mxu0 0.0
    %130 = vmatprep.subr.mxu0 0.0
    %131 = vmatpush1.msra.mxu0 0.0
    %132 = vmatprep.subr.mxu0 0.0
    %133 = vmatpush1.msra.mxu0 0.0
    %134 = vmatprep.subr.mxu0 0.0
    %135 = vmatpush1.msra.mxu0 0.0
    %136 = vmatprep.subr.mxu0 0.0
    %137 = vmatpush1.msra.mxu0 0.0
    %138 = vmatprep.subr.mxu0 0.0
    %139 = vmatpush1.msra.mxu0 0.0
    %140 = vmatprep.subr.mxu0 0.0
    %141 = vmatpush1.msra.mxu0 0.0
    %142 = vmatprep.subr.mxu0 0.0
    %143 = vmatpush1.msra.mxu0 0.0
    %144 = vmatprep.subr.mxu0 0.0
    %145 = vmatpush1.msra.mxu0 0.0
    %146 = vmatprep.subr.mxu0 0.0
    %147 = vmatpush1.msra.mxu0 0.0
    %148 = vmatprep.subr.mxu0 0.0
    %149 = vmatpush1.msra.mxu0 0.0
    %150 = vmatprep.subr.mxu0 0.0
    %151 = vmatpush1.msra.mxu0 0.0
    %152 = vmatprep.subr.mxu0 0.0
    %153 = vmatpush1.msra.mxu0 0.0
    %154 = vmatprep.subr.mxu0 0.0
    %155 = vmatpush1.msra.mxu0 0.0
    %156 = vmatprep.mubr.f32.mxu0 0.0
    %157 = vmatmul.mubr.f32.gmra.mrb[0].mxu0 %v87
    %v158 = vpop.f32.mrb[0].mxu0
    %v159 = vadd.f32 %v84, %v158
    %v160 = vpop.f32.mrb[0].mxu0
    %161 = vmatprep.mubr.f32.mxu0 0.0
    %162 = vmatmul.mubr.f32.gmra.mrb[0].mxu0 %v90
    %v163 = vpop.f32.mrb[0].mxu0
    %v164 = vadd.f32 %v84, %v163
    %v165 = vpop.f32.mrb[0].mxu0
    %166 = vdwg.mxu0
    %v167 = vmax.f32 %v159, 0.0
    %v168 = vmax.f32 %v164, 0.0
    %v169 = vld [vmem:[%s5] sm:$0xff]
    %v170 = vld [vmem:[%s5 + $0x8] sm:$0xff]
    %v171 = vld [vmem:[%s6] sm:$0x1]
    %v173 = vlaneseq
    %v174 = vshrl.u32 %v173, 7
    %v175 = vsub.s32 0, %v174
    %v176 = vrot.slane %v171, %v175
    %vm178 = vcmask 130048
    %v180 = vsel %vm178, %v167, 0
    %v183 = vsel %vm178, %v168, 0
    %185 = vmatprep.subr.mxu0 0.0
    %186 = vmatpush1.msra.mxu0 %v169
    %187 = vmatprep.subr.mxu0 0.0
    %188 = vmatpush1.msra.mxu0 %v170
    %189 = vmatprep.subr.mxu0 0.0
    %190 = vmatpush1.msra.mxu0 0.0
    %191 = vmatprep.subr.mxu0 0.0
    %192 = vmatpush1.msra.mxu0 0.0
    %193 = vmatprep.subr.mxu0 0.0
    %194 = vmatpush1.msra.mxu0 0.0
    %195 = vmatprep.subr.mxu0 0.0
    %196 = vmatpush1.msra.mxu0 0.0
    %197 = vmatprep.subr.mxu0 0.0
    %198 = vmatpush1.msra.mxu0 0.0
    %199 = vmatprep.subr.mxu0 0.0
    %200 = vmatpush1.msra.mxu0 0.0
    %201 = vmatprep.subr.mxu0 0.0
    %202 = vmatpush1.msra.mxu0 0.0
    %203 = vmatprep.subr.mxu0 0.0
    %204 = vmatpush1.msra.mxu0 0.0
    %205 = vmatprep.subr.mxu0 0.0
    %206 = vmatpush1.msra.mxu0 0.0
    %207 = vmatprep.subr.mxu0 0.0
    %208 = vmatpush1.msra.mxu0 0.0
    %209 = vmatprep.subr.mxu0 0.0
    %210 = vmatpush1.msra.mxu0 0.0
    %211 = vmatprep.subr.mxu0 0.0
    %212 = vmatpush1.msra.mxu0 0.0
    %213 = vmatprep.subr.mxu0 0.0
    %214 = vmatpush1.msra.mxu0 0.0
    %215 = vmatprep.subr.mxu0 0.0
    %216 = vmatpush1.msra.mxu0 0.0
    %217 = vmatprep.subr.mxu0 0.0
    %218 = vmatpush1.msra.mxu0 0.0
    %219 = vmatprep.subr.mxu0 0.0
    %220 = vmatpush1.msra.mxu0 0.0
    %221 = vmatprep.subr.mxu0 0.0
    %222 = vmatpush1.msra.mxu0 0.0
    %223 = vmatprep.subr.mxu0 0.0
    %224 = vmatpush1.msra.mxu0 0.0
    %225 = vmatprep.subr.mxu0 0.0
    %226 = vmatpush1.msra.mxu0 0.0
    %227 = vmatprep.subr.mxu0 0.0
    %228 = vmatpush1.msra.mxu0 0.0
    %229 = vmatprep.subr.mxu0 0.0
    %230 = vmatpush1.msra.mxu0 0.0
    %231 = vmatprep.subr.mxu0 0.0
    %232 = vmatpush1.msra.mxu0 0.0
    %233 = vmatprep.subr.mxu0 0.0
    %234 = vmatpush1.msra.mxu0 0.0
    %235 = vmatprep.subr.mxu0 0.0
    %236 = vmatpush1.msra.mxu0 0.0
    %237 = vmatprep.subr.mxu0 0.0
    %238 = vmatpush1.msra.mxu0 0.0
    %239 = vmatprep.subr.mxu0 0.0
    %240 = vmatpush1.msra.mxu0 0.0
    %241 = vmatprep.subr.mxu0 0.0
    %242 = vmatpush1.msra.mxu0 0.0
    %243 = vmatprep.subr.mxu0 0.0
    %244 = vmatpush1.msra.mxu0 0.0
    %245 = vmatprep.subr.mxu0 0.0
    %246 = vmatpush1.msra.mxu0 0.0
    %247 = vmatprep.subr.mxu0 0.0
    %248 = vmatpush1.msra.mxu0 0.0
    %249 = vmatprep.mubr.f32.mxu0 0.0
    %250 = vmatmul.mubr.f32.gmra.mrb[0].mxu0 %v180
    %v251 = vpop.f32.mrb[0].mxu0
    %v252 = vadd.f32 %v176, %v251
    %v253 = vpop.f32.mrb[0].mxu0
    %254 = vmatprep.mubr.f32.mxu0 0.0
    %255 = vmatmul.mubr.f32.gmra.mrb[0].mxu0 %v183
    %v256 = vpop.f32.mrb[0].mxu0
    %v257 = vadd.f32 %v176, %v256
    %v258 = vpop.f32.mrb[0].mxu0
    %259 = vdwg.mxu0
    %v260 = vmul.f32 %v252, 0.1
    %v261 = vmul.f32 %v257, 0.1
    %262 = vst.msk [vmem:[#allocation2] sm:$0xff] %vm29, %v260
    %263 = vst.msk [vmem:[#allocation2 + $0x8] sm:$0xff] %vm29, %v261
    // Predicated region
    $region30: #{tpu_custom_call.1} parent=1 // pred_check
      _
    $region31: #{tpu_custom_call.1} parent=1 // pred_check_branch
      %265 = sbr.rel (0) target = $region33
    $region32: #{tpu_custom_call.1} parent=1 // pred_region
      %s267 = ssub.s32 256, 256
      %268 = vsyncadd [#allocation3], %s267
      %s269 = sshll.u32 [#allocation2], 4
      %s270 = int_to_ptr.vmem [resolvable:$true] %s269
      %275 = dma.vmem_to_hbm [thread:$0]  %s270, 256, %s7, [#allocation3], 128, 128, 8
    $region33: #{tpu_custom_call.1} parent=1 // pred_fallthru
      _
    // Predicated region
    $region34: #{tpu_custom_call.1} parent=1 // pred_check
      _
    $region35: #{tpu_custom_call.1} parent=1 // pred_check_branch
      %277 = sbr.rel (0) target = $region37
    $region36: #{tpu_custom_call.1} parent=1 // pred_region
      %278 = dma.done [#allocation3], 256
    $region37: #{tpu_custom_call.1} parent=1 // pred_fallthru
      _
    %279 = vsyncpa [#allocation3], 1

// kernel: tpu_custom_call.1
$region0: #{tpu_custom_call.1}
  #allocation0 [shape = 'u32[]', space=smem, size = 0x4, offset = 0x4, fixed_abs, tag = 'smem constant byte address 0x4 - core index']
  #allocation1 [shape = 'u32[144,128]{1,0:T(1,128)}', space=vmem, size = 0x12000, scoped, tag = 'internal scratch']
  %s0 = inlined_call_operand.vmem [shape: f32[16,32], index: 0, kind: input, shape index: {}]
  %s1 = inlined_call_operand.vmem [shape: f32[1,32], index: 1, kind: input, shape index: {}]
  %s2 = inlined_call_operand.vmem [shape: f32[1,32], index: 2, kind: input, shape index: {}]
  %s3 = inlined_call_operand.vmem [shape: f32[32,16], index: 3, kind: input, shape index: {}]
  %s4 = inlined_call_operand.vmem [shape: f32[1,16], index: 4, kind: input, shape index: {}]
  %s5 = inlined_call_operand.vmem [shape: f32[16,32], index: 5, kind: input, shape index: {}]
  %s6 = inlined_call_operand.vmem [shape: f32[1,32], index: 6, kind: input, shape index: {}]
  %s7 = inlined_call_operand.hbm [shape: f32[16,32], index: 7, kind: output, shape index: {}]
  %s8 = sld [smem:[#allocation0]]
  $region38: #{tpu_custom_call.1} parent=0
    _
  %s10 = ssub.s32 1, %s8
  %s11 = scalar_select 0, %s10, %s8
  $region1: #{tpu_custom_call.1} parent=0
    #allocation2 [shape = 'u8[8192]{0}', space=vmem, size = 0x2000, scoped, tag = 'output window, operand 0, single buffered']
    #allocation3 [shape = 's32[1]{0}', space=sflag, size = 0x4, scoped, tag = 'scoped memory for tpu_custom_call.1']
    %12 = vsyncpa [#allocation3], 0
    // Predicated region
    $region2: #{tpu_custom_call.1} parent=1 // pred_check
      _
    $region3: #{tpu_custom_call.1} parent=1 // pred_check_branch
      %14 = sbr.rel (0) target = $region5
    $region4: #{tpu_custom_call.1} parent=1 // pred_region
      _
    $region5: #{tpu_custom_call.1} parent=1 // pred_fallthru
      _
    // Predicated region
    $region6: #{tpu_custom_call.1} parent=1 // pred_check
      _
    $region7: #{tpu_custom_call.1} parent=1 // pred_check_branch
      %16 = sbr.rel (0) target = $region9
    $region8: #{tpu_custom_call.1} parent=1 // pred_region
      _
    $region9: #{tpu_custom_call.1} parent=1 // pred_fallthru
      _
    // Predicated region
    $region10: #{tpu_custom_call.1} parent=1 // pred_check
      _
    $region11: #{tpu_custom_call.1} parent=1 // pred_check_branch
      %18 = sbr.rel (0) target = $region13
    $region12: #{tpu_custom_call.1} parent=1 // pred_region
      _
    $region13: #{tpu_custom_call.1} parent=1 // pred_fallthru
      _
    // Predicated region
    $region14: #{tpu_custom_call.1} parent=1 // pred_check
      _
    $region15: #{tpu_custom_call.1} parent=1 // pred_check_branch
      %20 = sbr.rel (0) target = $region17
    $region16: #{tpu_custom_call.1} parent=1 // pred_region
      _
    $region17: #{tpu_custom_call.1} parent=1 // pred_fallthru
      _
    // Predicated region
    $region18: #{tpu_custom_call.1} parent=1 // pred_check
      _
    $region19: #{tpu_custom_call.1} parent=1 // pred_check_branch
      %22 = sbr.rel (0) target = $region21
    $region20: #{tpu_custom_call.1} parent=1 // pred_region
      _
    $region21: #{tpu_custom_call.1} parent=1 // pred_fallthru
      _
    // Predicated region
    $region22: #{tpu_custom_call.1} parent=1 // pred_check
      _
    $region23: #{tpu_custom_call.1} parent=1 // pred_check_branch
      %24 = sbr.rel (0) target = $region25
    $region24: #{tpu_custom_call.1} parent=1 // pred_region
      _
    $region25: #{tpu_custom_call.1} parent=1 // pred_fallthru
      _
    // Predicated region
    $region26: #{tpu_custom_call.1} parent=1 // pred_check
      _
    $region27: #{tpu_custom_call.1} parent=1 // pred_check_branch
      %26 = sbr.rel (0) target = $region29
    $region28: #{tpu_custom_call.1} parent=1 // pred_region
      _
    $region29: #{tpu_custom_call.1} parent=1 // pred_fallthru
      _
    %v27 = vld [vmem:[%s0] sm:$0xff]
    %v28 = vld [vmem:[%s0 + $0x8] sm:$0xff]
    %vm29 = vcmask 261120
    %v30 = vsel %vm29, %v27, 0.0
    %31 = vadd.xlane.f32.xlu0 %v30
    %v32 = vpop.xlane.xlu0 %31
    %v33 = vsel %vm29, %v28, 0.0
    %34 = vadd.xlane.f32.xlu0 %v33
    %v35 = vpop.xlane.xlu0 %34
    %v36 = vrcp.pop 32.0
    %v37 = vmul.f32 %v32, %v36
    %v38 = vmul.f32 %v35, %v36
    %v39 = vsub.f32 %v27, %v37
    %v40 = vsub.f32 %v28, %v38
    %v41 = vmul.f32 %v39, %v39
    %v42 = vmul.f32 %v40, %v40
    %v43 = vsel %vm29, %v41, 0.0
    %44 = vadd.xlane.f32.xlu0 %v43
    %v45 = vpop.xlane.xlu0 %44
    %v46 = vsel %vm29, %v42, 0.0
    %47 = vadd.xlane.f32.xlu0 %v46
    %v48 = vpop.xlane.xlu0 %47
    %v49 = vmul.f32 %v45, %v36
    %v50 = vmul.f32 %v48, %v36
    %v51 = vadd.f32 %v49, 1e-05
    %v52 = vadd.f32 %v50, 1e-05
    %v53 = vrsqrt.pop %v51
    %v54 = vrsqrt.pop %v52
    %v55 = vmul.f32 %v39, %v53
    %v56 = vmul.f32 %v40, %v54
    %v57 = vld [vmem:[%s1] sm:$0x1]
    %v59 = vlaneseq
    %v60 = vshrl.u32 %v59, 7
    %v61 = vsub.s32 0, %v60
    %v62 = vrot.slane %v57, %v61
    %v64 = vmul.f32 %v55, %v62
    %v65 = vmul.f32 %v56, %v62
    %v66 = vld [vmem:[%s2] sm:$0x1]
    %v68 = vlaneseq
    %v69 = vshrl.u32 %v68, 7
    %v70 = vsub.s32 0, %v69
    %v71 = vrot.slane %v66, %v70
    %v73 = vadd.f32 %v64, %v71
    %v74 = vadd.f32 %v65, %v71
    %v75 = vld [vmem:[%s3] sm:$0xff]
    %v76 = vld [vmem:[%s3 + $0x8] sm:$0xff]
    %v77 = vld [vmem:[%s3 + $0x10] sm:$0xff]
    %v78 = vld [vmem:[%s3 + $0x18] sm:$0xff]
    %v79 = vld [vmem:[%s4] sm:$0x1]
    %v81 = vlaneseq
    %v82 = vshrl.u32 %v81, 7
    %v83 = vsub.s32 0, %v82
    %v84 = vrot.slane %v79, %v83
    %v87 = vsel %vm29, %v73, 0
    %v90 = vsel %vm29, %v74, 0
    %92 = vmatprep.subr.mxu0 0.0
    %93 = vmatpush1.msra.mxu0 %v75
    %94 = vmatprep.subr.mxu0 0.0
    %95 = vmatpush1.msra.mxu0 %v76
    %96 = vmatprep.subr.mxu0 0.0
    %97 = vmatpush1.msra.mxu0 %v77
    %98 = vmatprep.subr.mxu0 0.0
    %99 = vmatpush1.msra.mxu0 %v78
    %100 = vmatprep.subr.mxu0 0.0
    %101 = vmatpush1.msra.mxu0 0.0
    %102 = vmatprep.subr.mxu0 0.0
    %103 = vmatpush1.msra.mxu0 0.0
    %104 = vmatprep.subr.mxu0 0.0
    %105 = vmatpush1.msra.mxu0 0.0
    %106 = vmatprep.subr.mxu0 0.0
    %107 = vmatpush1.msra.mxu0 0.0
    %108 = vmatprep.subr.mxu0 0.0
    %109 = vmatpush1.msra.mxu0 0.0
    %110 = vmatprep.subr.mxu0 0.0
    %111 = vmatpush1.msra.mxu0 0.0
    %112 = vmatprep.subr.mxu0 0.0
    %113 = vmatpush1.msra.mxu0 0.0
    %114 = vmatprep.subr.mxu0 0.0
    %115 = vmatpush1.msra.mxu0 0.0
    %116 = vmatprep.subr.mxu0 0.0
    %117 = vmatpush1.msra.mxu0 0.0
    %118 = vmatprep.subr.mxu0 0.0
    %119 = vmatpush1.msra.mxu0 0.0
    %120 = vmatprep.subr.mxu0 0.0
    %121 = vmatpush1.msra.mxu0 0.0
    %122 = vmatprep.subr.mxu0 0.0
    %123 = vmatpush1.msra.mxu0 0.0
    %124 = vmatprep.subr.mxu0 0.0
    %125 = vmatpush1.msra.mxu0 0.0
    %126 = vmatprep.subr.mxu0 0.0
    %127 = vmatpush1.msra.mxu0 0.0
    %128 = vmatprep.subr.mxu0 0.0
    %129 = vmatpush1.msra.mxu0 0.0
    %130 = vmatprep.subr.mxu0 0.0
    %131 = vmatpush1.msra.mxu0 0.0
    %132 = vmatprep.subr.mxu0 0.0
    %133 = vmatpush1.msra.mxu0 0.0
    %134 = vmatprep.subr.mxu0 0.0
    %135 = vmatpush1.msra.mxu0 0.0
    %136 = vmatprep.subr.mxu0 0.0
    %137 = vmatpush1.msra.mxu0 0.0
    %138 = vmatprep.subr.mxu0 0.0
    %139 = vmatpush1.msra.mxu0 0.0
    %140 = vmatprep.subr.mxu0 0.0
    %141 = vmatpush1.msra.mxu0 0.0
    %142 = vmatprep.subr.mxu0 0.0
    %143 = vmatpush1.msra.mxu0 0.0
    %144 = vmatprep.subr.mxu0 0.0
    %145 = vmatpush1.msra.mxu0 0.0
    %146 = vmatprep.subr.mxu0 0.0
    %147 = vmatpush1.msra.mxu0 0.0
    %148 = vmatprep.subr.mxu0 0.0
    %149 = vmatpush1.msra.mxu0 0.0
    %150 = vmatprep.subr.mxu0 0.0
    %151 = vmatpush1.msra.mxu0 0.0
    %152 = vmatprep.subr.mxu0 0.0
    %153 = vmatpush1.msra.mxu0 0.0
    %154 = vmatprep.subr.mxu0 0.0
    %155 = vmatpush1.msra.mxu0 0.0
    %156 = vmatprep.mubr.f32.mxu0 0.0
    %157 = vmatmul.mubr.f32.gmra.mrb[0].mxu0 %v87
    %v158 = vpop.f32.mrb[0].mxu0
    %v159 = vadd.f32 %v84, %v158
    %v160 = vpop.f32.mrb[0].mxu0
    %161 = vmatprep.mubr.f32.mxu0 0.0
    %162 = vmatmul.mubr.f32.gmra.mrb[0].mxu0 %v90
    %v163 = vpop.f32.mrb[0].mxu0
    %v164 = vadd.f32 %v84, %v163
    %v165 = vpop.f32.mrb[0].mxu0
    %166 = vdwg.mxu0
    %v167 = vmax.f32 %v159, 0.0
    %v168 = vmax.f32 %v164, 0.0
    %v169 = vld [vmem:[%s5] sm:$0xff]
    %v170 = vld [vmem:[%s5 + $0x8] sm:$0xff]
    %v171 = vld [vmem:[%s6] sm:$0x1]
    %v173 = vlaneseq
    %v174 = vshrl.u32 %v173, 7
    %v175 = vsub.s32 0, %v174
    %v176 = vrot.slane %v171, %v175
    %vm178 = vcmask 130048
    %v180 = vsel %vm178, %v167, 0
    %v183 = vsel %vm178, %v168, 0
    %185 = vmatprep.subr.mxu0 0.0
    %186 = vmatpush1.msra.mxu0 %v169
    %187 = vmatprep.subr.mxu0 0.0
    %188 = vmatpush1.msra.mxu0 %v170
    %189 = vmatprep.subr.mxu0 0.0
    %190 = vmatpush1.msra.mxu0 0.0
    %191 = vmatprep.subr.mxu0 0.0
    %192 = vmatpush1.msra.mxu0 0.0
    %193 = vmatprep.subr.mxu0 0.0
    %194 = vmatpush1.msra.mxu0 0.0
    %195 = vmatprep.subr.mxu0 0.0
    %196 = vmatpush1.msra.mxu0 0.0
    %197 = vmatprep.subr.mxu0 0.0
    %198 = vmatpush1.msra.mxu0 0.0
    %199 = vmatprep.subr.mxu0 0.0
    %200 = vmatpush1.msra.mxu0 0.0
    %201 = vmatprep.subr.mxu0 0.0
    %202 = vmatpush1.msra.mxu0 0.0
    %203 = vmatprep.subr.mxu0 0.0
    %204 = vmatpush1.msra.mxu0 0.0
    %205 = vmatprep.subr.mxu0 0.0
    %206 = vmatpush1.msra.mxu0 0.0
    %207 = vmatprep.subr.mxu0 0.0
    %208 = vmatpush1.msra.mxu0 0.0
    %209 = vmatprep.subr.mxu0 0.0
    %210 = vmatpush1.msra.mxu0 0.0
    %211 = vmatprep.subr.mxu0 0.0
    %212 = vmatpush1.msra.mxu0 0.0
    %213 = vmatprep.subr.mxu0 0.0
    %214 = vmatpush1.msra.mxu0 0.0
    %215 = vmatprep.subr.mxu0 0.0
    %216 = vmatpush1.msra.mxu0 0.0
    %217 = vmatprep.subr.mxu0 0.0
    %218 = vmatpush1.msra.mxu0 0.0
    %219 = vmatprep.subr.mxu0 0.0
    %220 = vmatpush1.msra.mxu0 0.0
    %221 = vmatprep.subr.mxu0 0.0
    %222 = vmatpush1.msra.mxu0 0.0
    %223 = vmatprep.subr.mxu0 0.0
    %224 = vmatpush1.msra.mxu0 0.0
    %225 = vmatprep.subr.mxu0 0.0
    %226 = vmatpush1.msra.mxu0 0.0
    %227 = vmatprep.subr.mxu0 0.0
    %228 = vmatpush1.msra.mxu0 0.0
    %229 = vmatprep.subr.mxu0 0.0
    %230 = vmatpush1.msra.mxu0 0.0
    %231 = vmatprep.subr.mxu0 0.0
    %232 = vmatpush1.msra.mxu0 0.0
    %233 = vmatprep.subr.mxu0 0.0
    %234 = vmatpush1.msra.mxu0 0.0
    %235 = vmatprep.subr.mxu0 0.0
    %236 = vmatpush1.msra.mxu0 0.0
    %237 = vmatprep.subr.mxu0 0.0
    %238 = vmatpush1.msra.mxu0 0.0
    %239 = vmatprep.subr.mxu0 0.0
    %240 = vmatpush1.msra.mxu0 0.0
    %241 = vmatprep.subr.mxu0 0.0
    %242 = vmatpush1.msra.mxu0 0.0
    %243 = vmatprep.subr.mxu0 0.0
    %244 = vmatpush1.msra.mxu0 0.0
    %245 = vmatprep.subr.mxu0 0.0
    %246 = vmatpush1.msra.mxu0 0.0
    %247 = vmatprep.subr.mxu0 0.0
    %248 = vmatpush1.msra.mxu0 0.0
    %249 = vmatprep.mubr.f32.mxu0 0.0
    %250 = vmatmul.mubr.f32.gmra.mrb[0].mxu0 %v180
    %v251 = vpop.f32.mrb[0].mxu0
    %v252 = vadd.f32 %v176, %v251
    %v253 = vpop.f32.mrb[0].mxu0
    %254 = vmatprep.mubr.f32.mxu0 0.0
    %255 = vmatmul.mubr.f32.gmra.mrb[0].mxu0 %v183
    %v256 = vpop.f32.mrb[0].mxu0
    %v257 = vadd.f32 %v176, %v256
    %v258 = vpop.f32.mrb[0].mxu0
    %259 = vdwg.mxu0
    %v260 = vmul.f32 %v252, 0.1
    %v261 = vmul.f32 %v257, 0.1
    %262 = vst.msk [vmem:[#allocation2] sm:$0xff] %vm29, %v260
    %263 = vst.msk [vmem:[#allocation2 + $0x8] sm:$0xff] %vm29, %v261
    // Predicated region
    $region30: #{tpu_custom_call.1} parent=1 // pred_check
      _
    $region31: #{tpu_custom_call.1} parent=1 // pred_check_branch
      %265 = sbr.rel (0) target = $region33
    $region32: #{tpu_custom_call.1} parent=1 // pred_region
      %s267 = ssub.s32 256, 256
      %268 = vsyncadd [#allocation3], %s267
      %s269 = sshll.u32 [#allocation2], 4
      %s270 = int_to_ptr.vmem [resolvable:$true] %s269
      %275 = dma.vmem_to_hbm [thread:$0]  %s270, 256, %s7, [#allocation3], 128, 128, 8
    $region33: #{tpu_custom_call.1} parent=1 // pred_fallthru
      _
    // Predicated region
    $region34: #{tpu_custom_call.1} parent=1 // pred_check
      _
    $region35: #{tpu_custom_call.1} parent=1 // pred_check_branch
      %277 = sbr.rel (0) target = $region37
    $region36: #{tpu_custom_call.1} parent=1 // pred_region
      %278 = dma.done [#allocation3], 256
    $region37: #{tpu_custom_call.1} parent=1 // pred_fallthru
      _
    %279 = vsyncpa [#allocation3], 1

</llo_original>
